<compile_context>
chip_gen: v7x
topology: tpu7x:2x2x1
jax: 0.10.0
libtpu: 0.0.40
codegen_flags: <defaults>
</compile_context>

<pallas_src>
import math

import jax
import jax.numpy as jnp
from jax.experimental import pallas as pl
from jax.experimental.pallas import tpu as pltpu


def _sdpa_kernel(q_ref, k_ref, v_ref, bias_ref, out_ref, attn_ref):
    # q_ref:    (1, HP, TQ, D)  bf16
    # k_ref:    (1, HP, S,  D)  bf16
    # v_ref:    (1, HP, S,  D)  bf16
    # bias_ref: (1, QB, S)      bf16 additive bias, QB in {1, TQ}
    # out_ref:  (1, HP, TQ, D)  input dtype
    # attn_ref: (1, HP, TQ, S)  weights dtype (bf16 by default)
    q = q_ref[0]
    k = k_ref[0]
    v = v_ref[0]

    d_k = q.shape[-1]
    # Scale the small (HP, TQ, D) q tile once, staying in the MXU dtype.
    q = q * (1.0 / math.sqrt(d_k))

    # scores = q @ k^T per head: contract last dims, no k.T materialized.
    scores = jnp.einsum(
        "hqd,hkd->hqk", q, k, preferred_element_type=jnp.float32
    )  # (HP, TQ, S) f32

    # masked_fill(mask == 0, -inf) expressed as an additive (0 / -1e30) bias.
    scores = scores + bias_ref[...].astype(jnp.float32)

    # Numerically stable softmax over keys (f32 throughout).
    row_max = jnp.max(scores, axis=-1, keepdims=True)
    ex = jnp.exp(scores - row_max)
    denom = jnp.sum(ex, axis=-1, keepdims=True)
    weights = ex * pl.reciprocal(denom, approx=True)

    attn_ref[0] = weights.astype(attn_ref.dtype)

    # output = weights @ v (bf16 operands, f32 accumulation on the MXU).
    out = jnp.einsum(
        "hqk,hkd->hqd", weights.astype(v.dtype), v,
        preferred_element_type=jnp.float32,
    )
    out_ref[0] = out.astype(out_ref.dtype)


def _mask_to_bias(mask, B, S):
    """Convert a 0/1 (or bool) mask broadcast over heads into a bf16 additive
    bias of shape [B, 1, S] (per-key) or [B, S, S] (per-query)."""
    NEG = -1e30  # large finite negative: no NaN on fully-masked rows
    if mask is None:
        return jnp.zeros((B, 1, S), jnp.bfloat16)
    m = jnp.asarray(mask)
    if m.ndim == 4:
        # [B, 1, Sq, S] — broadcast over heads, as in BERT.
        assert m.shape[1] == 1, "mask must broadcast over heads ([B,1,*,S])"
        m = m[:, 0]                      # [B, Sq, S], Sq in {1, S}
    elif m.ndim == 2:
        m = m[:, None, :]                # [B, 1, S]
    # else: already [B, Sq, S]
    return jnp.where(m == 0, NEG, 0.0).astype(jnp.bfloat16)


def _vmem_capacity_bytes():
    """Per-core VMEM capacity; conservative 64 MiB (v7x) fallback."""
    try:
        info = pltpu.get_tpu_info()
        cap = getattr(info, "vmem_capacity_bytes", None)
        if cap:
            return int(cap)
    except Exception:
        pass
    return 64 * (1 << 20)


def scaled_dot_product_attention(q, k, v, mask=None, *, tq=None,
                                 mxu_dtype=jnp.bfloat16,
                                 weights_dtype=jnp.bfloat16):
    """q, k, v: [B, H, S, D]. mask: None / [B,S] / [B,1,1,S] / [B,1,S,S]
    (0 == masked). Returns (attention_output [B,H,S,D],
    attention_weight [B,H,S,S])."""
    B, H, S, D = q.shape
    HP = 2 if (H % 2 == 0) else 1        # heads packed per grid step

    bias = _mask_to_bias(mask, B, S)
    per_query_mask = bias.shape[1] != 1

    # Cast q/k/v once in the wrapper: halves their HBM traffic & VMEM footprint.
    q_mx = q.astype(mxu_dtype)
    k_mx = k.astype(mxu_dtype)
    v_mx = v.astype(mxu_dtype)

    itm_mx = jnp.dtype(mxu_dtype).itemsize
    itm_out = jnp.dtype(q.dtype).itemsize
    itm_w = jnp.dtype(weights_dtype).itemsize
    itm_b = jnp.dtype(bias.dtype).itemsize

    vmem_cap = int(0.75 * _vmem_capacity_bytes())   # 25% headroom

    if tq is None:
        tq = 256 if S < 4096 else 128
    tq = max(8, min(tq, S))

    def _vmem_need(tq_):
        bias_rows = min(tq_, S) if per_query_mask else 1
        io = (HP * tq_ * D * itm_mx        # q tile
              + 2 * HP * S * D * itm_mx    # k + v
              + bias_rows * S * itm_b      # bias
              + HP * tq_ * D * itm_out     # out tile
              + HP * tq_ * S * itm_w)      # attention-weight tile
        interm = 3 * HP * tq_ * S * 4      # scores/exp/weights f32 live copies
        return 2 * io + interm + (4 << 20)  # double-buffered IO + margin

    while _vmem_need(tq) > vmem_cap and tq > 128:
        tq = max(128, tq // 2)
    vmem_limit = int(min(vmem_cap, max(32 * (1 << 20), _vmem_need(tq))))

    num_q = pl.cdiv(S, tq)
    grid = (B, H // HP, num_q)

    q_spec = pl.BlockSpec((1, HP, tq, D), lambda b, h, qi: (b, h, qi, 0))
    kv_spec = pl.BlockSpec((1, HP, S, D), lambda b, h, qi: (b, h, 0, 0))
    if per_query_mask:
        bias_spec = pl.BlockSpec((1, tq, S), lambda b, h, qi: (b, qi, 0))
    else:
        bias_spec = pl.BlockSpec((1, 1, S), lambda b, h, qi: (b, 0, 0))
    out_spec = pl.BlockSpec((1, HP, tq, D), lambda b, h, qi: (b, h, qi, 0))
    attn_spec = pl.BlockSpec((1, HP, tq, S), lambda b, h, qi: (b, h, qi, 0))

    out, attn = pl.pallas_call(
        _sdpa_kernel,
        out_shape=(
            jax.ShapeDtypeStruct((B, H, S, D), q.dtype),
            jax.ShapeDtypeStruct((B, H, S, S), weights_dtype),
        ),
        grid_spec=pltpu.PrefetchScalarGridSpec(
            num_scalar_prefetch=0,
            grid=grid,
            in_specs=[q_spec, kv_spec, kv_spec, bias_spec],
            out_specs=[out_spec, attn_spec],
        ),
        compiler_params=pltpu.CompilerParams(
            # B/H parallel (megacore shards there); q axis arbitrary so each
            # core keeps its K/V block resident across all q tiles of a head.
            dimension_semantics=("parallel", "parallel", "arbitrary"),
            vmem_limit_bytes=vmem_limit,
        ),
    )(q_mx, k_mx, v_mx, bias)
    return out, attn


def _reference(q, k, v, mask):
    d_k = q.shape[-1]
    scores = jnp.einsum("bhqd,bhkd->bhqk", q, k) / math.sqrt(d_k)
    if mask is not None:
        scores = jnp.where(mask == 0, -jnp.inf, scores)
    w = jax.nn.softmax(scores, axis=-1)
    out = jnp.einsum("bhqk,bhkd->bhqd", w, v)
    return out, w


if __name__ == "__main__":
    key = jax.random.PRNGKey(0)
    kq, kk, kv = jax.random.split(key, 3)

    B, H, S, D = 2, 4, 8, 32
    q = jax.random.normal(kq, (B, H, S, D), dtype=jnp.float32)
    k = jax.random.normal(kk, (B, H, S, D), dtype=jnp.float32)
    v = jax.random.normal(kv, (B, H, S, D), dtype=jnp.float32)

    # BERT-style key-padding mask: last 2 key positions of batch 1 masked out.
    pad_mask = jnp.ones((B, 1, 1, S), dtype=jnp.int32)
    pad_mask = pad_mask.at[1, :, :, -2:].set(0)

    # General per-query mask (causal), broadcast over heads.
    causal = jnp.tril(jnp.ones((S, S), dtype=jnp.int32))[None, None]
    causal_mask = jnp.broadcast_to(causal, (B, 1, S, S))

    for m in (None, pad_mask, causal_mask):
        out, attn = scaled_dot_product_attention(q, k, v, m)
        out = jax.block_until_ready(out)
        attn = jax.block_until_ready(attn)

        ref_out, ref_attn = _reference(q, k, v, m)
        # Tolerances cover bf16 MXU operands, bf16 weight storage and the
        # approximate EUP reciprocal.
        assert jnp.allclose(out, ref_out, atol=3e-2, rtol=3e-2), "output mismatch"
        assert jnp.allclose(attn.astype(jnp.float32), ref_attn,
                            atol=1e-2, rtol=3e-2), "weights mismatch"

    # Odd head count exercises the 1-head-per-step (no packing) path.
    q3, k3, v3 = q[:, :3], k[:, :3], v[:, :3]
    out3, attn3 = scaled_dot_product_attention(q3, k3, v3, pad_mask)
    out3 = jax.block_until_ready(out3)
    ref_out3, ref_attn3 = _reference(q3, k3, v3, pad_mask)
    assert jnp.allclose(out3, ref_out3, atol=3e-2, rtol=3e-2), "output mismatch (H=3)"
    assert jnp.allclose(attn3.astype(jnp.float32), ref_attn3,
                        atol=1e-2, rtol=3e-2), "weights mismatch (H=3)"

    print("KERNEL_OK")
</pallas_src>

<mosaic_0001>
module attributes {stable_mosaic.version = 11 : i64} {
  func.func @_sdpa_kernel(%arg0: i32, %arg1: i32, %arg2: i32, %arg3: memref<1x2x8x32xbf16, #tpu.memory_space<vmem>>, %arg4: memref<1x2x8x32xbf16, #tpu.memory_space<vmem>>, %arg5: memref<1x2x8x32xbf16, #tpu.memory_space<vmem>>, %arg6: memref<1x1x8xbf16, #tpu.memory_space<vmem>>, %arg7: memref<1x2x8x32xf32, #tpu.memory_space<vmem>>, %arg8: memref<1x2x8x8xbf16, #tpu.memory_space<vmem>>) attributes {dimension_semantics = [#tpu.dimension_semantics<parallel>, #tpu.dimension_semantics<parallel>, #tpu.dimension_semantics<arbitrary>], iteration_bounds = array<i64: 2, 2, 1>, scalar_prefetch = 0 : i64, scratch_operands = 0 : i64, tpu.core_type = #tpu.core_type<tc>, window_params = [{transform_indices = @transform_0, window_bounds = array<i64: 1, 2, 8, 32>}, {transform_indices = @transform_1, window_bounds = array<i64: 1, 2, 8, 32>}, {transform_indices = @transform_2, window_bounds = array<i64: 1, 2, 8, 32>}, {transform_indices = @transform_3, window_bounds = array<i64: 1, 1, 8>}, {transform_indices = @transform_4, window_bounds = array<i64: 1, 2, 8, 32>}, {transform_indices = @transform_5, window_bounds = array<i64: 1, 2, 8, 8>}]} {
    %c0 = arith.constant 0 : index
    %c0_0 = arith.constant 0 : index
    %c0_1 = arith.constant 0 : index
    %c0_2 = arith.constant 0 : index
    %0 = vector.load %arg3[%c0, %c0_0, %c0_1, %c0_2] : memref<1x2x8x32xbf16, #tpu.memory_space<vmem>>, vector<1x2x8x32xbf16>
    %1 = vector.shape_cast %0 : vector<1x2x8x32xbf16> to vector<2x8x32xbf16>
    %c0_3 = arith.constant 0 : index
    %c0_4 = arith.constant 0 : index
    %c0_5 = arith.constant 0 : index
    %c0_6 = arith.constant 0 : index
    %2 = vector.load %arg4[%c0_3, %c0_4, %c0_5, %c0_6] : memref<1x2x8x32xbf16, #tpu.memory_space<vmem>>, vector<1x2x8x32xbf16>
    %3 = vector.shape_cast %2 : vector<1x2x8x32xbf16> to vector<2x8x32xbf16>
    %c0_7 = arith.constant 0 : index
    %c0_8 = arith.constant 0 : index
    %c0_9 = arith.constant 0 : index
    %c0_10 = arith.constant 0 : index
    %4 = vector.load %arg5[%c0_7, %c0_8, %c0_9, %c0_10] : memref<1x2x8x32xbf16, #tpu.memory_space<vmem>>, vector<1x2x8x32xbf16>
    %5 = vector.shape_cast %4 : vector<1x2x8x32xbf16> to vector<2x8x32xbf16>
    %cst = arith.constant 1.767580e-01 : bf16
    %6 = vector.broadcast %cst : bf16 to vector<2x8x32xbf16>
    %7 = arith.mulf %1, %6 : vector<2x8x32xbf16>
    "tpu.trace_start"() <{level = 10 : i32, message = "hqd,hkd->hqk"}> : () -> ()
    %cst_11 = arith.constant dense<0.000000e+00> : vector<2x8x8xf32>
    %8 = tpu.matmul %7, %3, %cst_11 {dimension_numbers = #tpu.dot_dimension_numbers<[2], [2], [1], [1], [0, 0, 0, 1, 1, 1], [0], [0]>} : vector<2x8x32xbf16>, vector<2x8x32xbf16>, vector<2x8x8xf32> -> vector<2x8x8xf32>
    "tpu.trace_stop"() : () -> ()
    %c0_12 = arith.constant 0 : index
    %c0_13 = arith.constant 0 : index
    %c0_14 = arith.constant 0 : index
    %9 = vector.load %arg6[%c0_12, %c0_13, %c0_14] : memref<1x1x8xbf16, #tpu.memory_space<vmem>>, vector<1x1x8xbf16>
    %10 = arith.extf %9 : vector<1x1x8xbf16> to vector<1x1x8xf32>
    %11 = vector.broadcast %10 : vector<1x1x8xf32> to vector<2x8x8xf32>
    %12 = arith.addf %8, %11 : vector<2x8x8xf32>
    %cst_15 = arith.constant dense<0xFF800000> : vector<2x8xf32>
    %13 = vector.multi_reduction <maximumf>, %12, %cst_15 [2] : vector<2x8x8xf32> to vector<2x8xf32>
    %14 = vector.shape_cast %13 : vector<2x8xf32> to vector<2x8x1xf32>
    %15 = vector.broadcast %14 : vector<2x8x1xf32> to vector<2x8x8xf32>
    %16 = arith.subf %12, %15 : vector<2x8x8xf32>
    %17 = math.exp %16 : vector<2x8x8xf32>
    %cst_16 = arith.constant dense<0.000000e+00> : vector<2x8xf32>
    %18 = vector.multi_reduction <add>, %17, %cst_16 [2] : vector<2x8x8xf32> to vector<2x8xf32>
    %19 = vector.shape_cast %18 : vector<2x8xf32> to vector<2x8x1xf32>
    %20 = tpu.reciprocal %19 {approx = true} : vector<2x8x1xf32> -> vector<2x8x1xf32>
    %21 = vector.broadcast %20 : vector<2x8x1xf32> to vector<2x8x8xf32>
    %22 = arith.mulf %17, %21 : vector<2x8x8xf32>
    %23 = arith.truncf %22 : vector<2x8x8xf32> to vector<2x8x8xbf16>
    %c0_17 = arith.constant 0 : index
    %c0_18 = arith.constant 0 : index
    %c0_19 = arith.constant 0 : index
    %c0_20 = arith.constant 0 : index
    %24 = vector.load %arg8[%c0_17, %c0_18, %c0_19, %c0_20] : memref<1x2x8x8xbf16, #tpu.memory_space<vmem>>, vector<1x2x8x8xbf16>
    %25 = vector.shape_cast %24 : vector<1x2x8x8xbf16> to vector<2x8x8xbf16>
    %26 = vector.shape_cast %23 : vector<2x8x8xbf16> to vector<1x2x8x8xbf16>
    tpu.vector_store %arg8[%c0_17, %c0_18, %c0_19, %c0_20], %26 {strides = array<i32>} : memref<1x2x8x8xbf16, #tpu.memory_space<vmem>>, vector<1x2x8x8xbf16>,
    %27 = arith.truncf %22 : vector<2x8x8xf32> to vector<2x8x8xbf16>
    "tpu.trace_start"() <{level = 10 : i32, message = "hqk,hkd->hqd"}> : () -> ()
    %cst_21 = arith.constant dense<0.000000e+00> : vector<2x8x32xf32>
    %28 = tpu.matmul %27, %5, %cst_21 {dimension_numbers = #tpu.dot_dimension_numbers<[2], [1], [1], [2], [0, 0, 0, 1, 1, 2], [0], [0]>} : vector<2x8x8xbf16>, vector<2x8x32xbf16>, vector<2x8x32xf32> -> vector<2x8x32xf32>
    "tpu.trace_stop"() : () -> ()
    %c0_22 = arith.constant 0 : index
    %c0_23 = arith.constant 0 : index
    %c0_24 = arith.constant 0 : index
    %c0_25 = arith.constant 0 : index
    %29 = vector.load %arg7[%c0_22, %c0_23, %c0_24, %c0_25] : memref<1x2x8x32xf32, #tpu.memory_space<vmem>>, vector<1x2x8x32xf32>
    %30 = vector.shape_cast %29 : vector<1x2x8x32xf32> to vector<2x8x32xf32>
    %31 = vector.shape_cast %28 : vector<2x8x32xf32> to vector<1x2x8x32xf32>
    tpu.vector_store %arg7[%c0_22, %c0_23, %c0_24, %c0_25], %31 {strides = array<i32>} : memref<1x2x8x32xf32, #tpu.memory_space<vmem>>, vector<1x2x8x32xf32>,
    return
  }
  func.func @transform_0(%arg0: i32, %arg1: i32, %arg2: i32) -> (i32, i32, i32, i32) {
    %c0_i32 = arith.constant 0 : i32
    %c0_i32_0 = arith.constant 0 : i32
    return %arg0, %arg1, %arg2, %c0_i32 : i32, i32, i32, i32
  }
  func.func @transform_1(%arg0: i32, %arg1: i32, %arg2: i32) -> (i32, i32, i32, i32) {
    %c0_i32 = arith.constant 0 : i32
    %c0_i32_0 = arith.constant 0 : i32
    %c0_i32_1 = arith.constant 0 : i32
    return %arg0, %arg1, %c0_i32, %c0_i32_0 : i32, i32, i32, i32
  }
  func.func @transform_2(%arg0: i32, %arg1: i32, %arg2: i32) -> (i32, i32, i32, i32) {
    %c0_i32 = arith.constant 0 : i32
    %c0_i32_0 = arith.constant 0 : i32
    %c0_i32_1 = arith.constant 0 : i32
    return %arg0, %arg1, %c0_i32, %c0_i32_0 : i32, i32, i32, i32
  }
  func.func @transform_3(%arg0: i32, %arg1: i32, %arg2: i32) -> (i32, i32, i32) {
    %c0_i32 = arith.constant 0 : i32
    %c0_i32_0 = arith.constant 0 : i32
    %c0_i32_1 = arith.constant 0 : i32
    return %arg0, %c0_i32, %c0_i32_0 : i32, i32, i32
  }
  func.func @transform_4(%arg0: i32, %arg1: i32, %arg2: i32) -> (i32, i32, i32, i32) {
    %c0_i32 = arith.constant 0 : i32
    %c0_i32_0 = arith.constant 0 : i32
    return %arg0, %arg1, %arg2, %c0_i32 : i32, i32, i32, i32
  }
  func.func @transform_5(%arg0: i32, %arg1: i32, %arg2: i32) -> (i32, i32, i32, i32) {
    %c0_i32 = arith.constant 0 : i32
    %c0_i32_0 = arith.constant 0 : i32
    return %arg0, %arg1, %arg2, %c0_i32 : i32, i32, i32, i32
  }
}

</mosaic_0001>

<llo_original>
// kernel: tpu_custom_call.1
$region0: #{tpu_custom_call.1}
  #allocation0 [shape = 'u32[]', space=smem, size = 0x4, offset = 0x4, fixed_abs, tag = 'smem constant byte address 0x4 - core index']
  #allocation1 [shape = 'u32[144,128]{1,0:T(1,128)}', space=vmem, size = 0x12000, scoped, tag = 'internal scratch']
  %s0 = inlined_call_operand.hbm [shape: bf16[2,4,8,32], index: 0, kind: input, shape index: {}]
  %s1 = inlined_call_operand.hbm [shape: bf16[2,4,8,32], index: 1, kind: input, shape index: {}]
  %s2 = inlined_call_operand.hbm [shape: bf16[2,4,8,32], index: 2, kind: input, shape index: {}]
  %s3 = inlined_call_operand.vmem [shape: bf16[2,1,8], index: 3, kind: input, shape index: {}]
  %s4 = inlined_call_operand.hbm [shape: f32[2,4,8,32], index: 4, kind: output, shape index: {0}]
  %s5 = inlined_call_operand.hbm [shape: bf16[2,4,8,8], index: 5, kind: output, shape index: {1}]
  %6 = xla_tuple %s4, %s5
  %s7 = sld [smem:[#allocation0]]
  $region69: #{tpu_custom_call.1} parent=0
    _
  %s9 = ssub.s32 1, %s7
  %s10 = scalar_select 0, %s9, %s7
  $region1: #{tpu_custom_call.1} parent=0
    #allocation2 [shape = 'u8[8192]{0}', space=vmem, size = 0x2000, scoped, tag = 'input window, operand 0']
    #allocation3 [shape = 's32[2]{0}', space=sflag, size = 0x8, scoped, tag = 'scoped memory for tpu_custom_call.1']
    #allocation4 [shape = 's32[2]{0}', space=sflag, size = 0x8, scoped, tag = 'scoped memory for tpu_custom_call.1']
    #allocation5 [shape = 'u8[8192]{0}', space=vmem, size = 0x2000, scoped, tag = 'input window, operand 1']
    #allocation6 [shape = 's32[2]{0}', space=sflag, size = 0x8, scoped, tag = 'scoped memory for tpu_custom_call.1']
    #allocation7 [shape = 'u8[8192]{0}', space=vmem, size = 0x2000, scoped, tag = 'input window, operand 2']
    #allocation8 [shape = 'u8[16384]{0}', space=vmem, size = 0x4000, scoped, tag = 'output window, operand 0']
    #allocation9 [shape = 'u8[8192]{0}', space=vmem, size = 0x2000, scoped, tag = 'output window, operand 1']
    #allocation10 [shape = 's32[2]{0}', space=sflag, size = 0x8, scoped, tag = 'scoped memory for tpu_custom_call.1']
    %11 = vsyncpa [#allocation3], 0
    %s12 = scalar_lea.sflag [#allocation3], 1
    %13 = vsyncpa %s12, 0
    %14 = vsyncpa [#allocation6], 0
    %s15 = scalar_lea.sflag [#allocation6], 1
    %16 = vsyncpa %s15, 0
    %17 = vsyncpa [#allocation4], 0
    %s18 = scalar_lea.sflag [#allocation4], 1
    %19 = vsyncpa %s18, 0
    %20 = vsyncpa [#allocation10], 0
    %s21 = scalar_lea.sflag [#allocation10], 1
    %22 = vsyncpa %s21, 0
    loop: start=0, step=1, limit=6
    $region2: #{tpu_custom_call.1} parent=1 // loop_pre_header
      _
    $region3: #{tpu_custom_call.1} parent=1 // loop_header
      %s24 = sphi 0, %s28
      %p25 = scmp.ge.s32.totalorder %s24, 6
      %s31 = sphi 0, %s50
      %s32 = sphi 0, %s46
      %s33 = sphi 0, %s42
      %s34 = sphi 0, %s31
      %s35 = sphi 0, %s32
      %s36 = sphi 0, %s33
      %s37 = sphi 0, %s34
      %s38 = sphi 0, %s35
      %s39 = sphi 0, %s36
      %s57 = sphi 0, %s59
      %s60 = sphi 0, %s57
      %s61 = sphi 0, %s60
      %s77 = sphi 0, %s61
      %s85 = sphi 0, %s87
      %s88 = sphi 0, %s85
      %s89 = sphi 0, %s88
      %s105 = sphi 0, %s89
      %s113 = sphi 0, %s115
      %s116 = sphi 0, %s113
      %s117 = sphi 0, %s116
      %s133 = sphi 0, %s117
      %s139 = sphi 0, %s141
      %s142 = sphi 0, %s139
      %s143 = sphi 0, %s142
      %s159 = sphi 0, %s143
      %s169 = sphi 0, %s171
      %s172 = sphi 0, %s169
      %s173 = sphi 0, %s172
      %s189 = sphi 0, %s173
      %s199 = sphi 0, %s201
      %s202 = sphi 0, %s199
      %s203 = sphi 0, %s202
      %s219 = sphi 0, %s203
    $region4: #{tpu_custom_call.1} parent=1 // loop_header_branch
      %27 = sbr.rel (%p25) target = $region8
    $region5: #{tpu_custom_call.1} parent=1 // loop_body
      %s29 = ssub.s32 %s24, 1
      %s30 = ssub.s32 %s24, 2
      %s40 = sadd.s32 1, %s33
      %p41 = scmp.ge.s32.totalorder %s40, 1
      %s42 = scalar_select %p41, 0, %s40
      %s43 = sadd.s32 1, %s32
      %s44 = scalar_select %p41, %s43, %s32
      %p45 = scmp.ge.s32.totalorder %s44, 2
      %s46 = scalar_select %p45, 0, %s44
      %s47 = sadd.s32 1, %s31
      %s48 = scalar_select %p45, %s47, %s31
      %p49 = scmp.ge.s32.totalorder %s48, 2
      %s50 = scalar_select %p49, 0, %s48
      %s51 = ssub.s32 %s31, %s50
      %s52 = ssub.s32 %s32, %s46
      %s53 = sor.u32 %s51, %s52
      %s54 = ssub.s32 %s33, %s42
      %s55 = sor.u32 %s53, %s54
      %p56 = scmp.eq.s32.totalorder %s55, 0
      %s58 = sadd.s32 %s57, 1
      %s59 = scalar_select %p56, %s57, %s58
      %p62 = pneg %p56
      %p63 = scmp.eq.s32.totalorder %s24, 3
      %p64 = por %p62, %p63
      %p65 = scmp.ne.s32.totalorder %s57, %s60
      %p66 = scmp.eq.s32.totalorder %s24, 0
      %p67 = por %p65, %p66
      %p68 = scmp.ne.s32.totalorder %s57, %s60
      %p69 = scmp.eq.s32.totalorder %s29, 3
      %p70 = por %p68, %p69
      %p71 = scmp.ne.s32.totalorder %s60, %s61
      %p72 = scmp.eq.s32.totalorder %s29, 0
      %p73 = por %p71, %p72
      %p74 = scmp.ne.s32.totalorder %s60, %s61
      %p75 = scmp.eq.s32.totalorder %s30, 3
      %p76 = por %p74, %p75
      %p78 = scmp.ne.s32.totalorder %s61, %s77
      %p79 = scmp.eq.s32.totalorder %s30, 0
      %p80 = por %p78, %p79
      %s81 = ssub.s32 %s31, %s50
      %s82 = ssub.s32 %s32, %s46
      %s83 = sor.u32 %s81, %s82
      %p84 = scmp.eq.s32.totalorder %s83, 0
      %s86 = sadd.s32 %s85, 1
      %s87 = scalar_select %p84, %s85, %s86
      %p90 = pneg %p84
      %p91 = scmp.eq.s32.totalorder %s24, 3
      %p92 = por %p90, %p91
      %p93 = scmp.ne.s32.totalorder %s85, %s88
      %p94 = scmp.eq.s32.totalorder %s24, 0
      %p95 = por %p93, %p94
      %p96 = scmp.ne.s32.totalorder %s85, %s88
      %p97 = scmp.eq.s32.totalorder %s29, 3
      %p98 = por %p96, %p97
      %p99 = scmp.ne.s32.totalorder %s88, %s89
      %p100 = scmp.eq.s32.totalorder %s29, 0
      %p101 = por %p99, %p100
      %p102 = scmp.ne.s32.totalorder %s88, %s89
      %p103 = scmp.eq.s32.totalorder %s30, 3
      %p104 = por %p102, %p103
      %p106 = scmp.ne.s32.totalorder %s89, %s105
      %p107 = scmp.eq.s32.totalorder %s30, 0
      %p108 = por %p106, %p107
      %s109 = ssub.s32 %s31, %s50
      %s110 = ssub.s32 %s32, %s46
      %s111 = sor.u32 %s109, %s110
      %p112 = scmp.eq.s32.totalorder %s111, 0
      %s114 = sadd.s32 %s113, 1
      %s115 = scalar_select %p112, %s113, %s114
      %p118 = pneg %p112
      %p119 = scmp.eq.s32.totalorder %s24, 3
      %p120 = por %p118, %p119
      %p121 = scmp.ne.s32.totalorder %s113, %s116
      %p122 = scmp.eq.s32.totalorder %s24, 0
      %p123 = por %p121, %p122
      %p124 = scmp.ne.s32.totalorder %s113, %s116
      %p125 = scmp.eq.s32.totalorder %s29, 3
      %p126 = por %p124, %p125
      %p127 = scmp.ne.s32.totalorder %s116, %s117
      %p128 = scmp.eq.s32.totalorder %s29, 0
      %p129 = por %p127, %p128
      %p130 = scmp.ne.s32.totalorder %s116, %s117
      %p131 = scmp.eq.s32.totalorder %s30, 3
      %p132 = por %p130, %p131
      %p134 = scmp.ne.s32.totalorder %s117, %s133
      %p135 = scmp.eq.s32.totalorder %s30, 0
      %p136 = por %p134, %p135
      %s137 = ssub.s32 %s31, %s50
      %p138 = scmp.eq.s32.totalorder %s137, 0
      %s140 = sadd.s32 %s139, 1
      %s141 = scalar_select %p138, %s139, %s140
      %p144 = pneg %p138
      %p145 = scmp.eq.s32.totalorder %s24, 3
      %p146 = por %p144, %p145
      %p147 = scmp.ne.s32.totalorder %s139, %s142
      %p148 = scmp.eq.s32.totalorder %s24, 0
      %p149 = por %p147, %p148
      %p150 = scmp.ne.s32.totalorder %s139, %s142
      %p151 = scmp.eq.s32.totalorder %s29, 3
      %p152 = por %p150, %p151
      %p153 = scmp.ne.s32.totalorder %s142, %s143
      %p154 = scmp.eq.s32.totalorder %s29, 0
      %p155 = por %p153, %p154
      %p156 = scmp.ne.s32.totalorder %s142, %s143
      %p157 = scmp.eq.s32.totalorder %s30, 3
      %p158 = por %p156, %p157
      %p160 = scmp.ne.s32.totalorder %s143, %s159
      %p161 = scmp.eq.s32.totalorder %s30, 0
      %p162 = por %p160, %p161
      %s163 = ssub.s32 %s31, %s50
      %s164 = ssub.s32 %s32, %s46
      %s165 = sor.u32 %s163, %s164
      %s166 = ssub.s32 %s33, %s42
      %s167 = sor.u32 %s165, %s166
      %p168 = scmp.eq.s32.totalorder %s167, 0
      %s170 = sadd.s32 %s169, 1
      %s171 = scalar_select %p168, %s169, %s170
      %p174 = pneg %p168
      %p175 = scmp.eq.s32.totalorder %s24, 3
      %p176 = por %p174, %p175
      %p177 = scmp.ne.s32.totalorder %s169, %s172
      %p178 = scmp.eq.s32.totalorder %s24, 0
      %p179 = por %p177, %p178
      %p180 = scmp.ne.s32.totalorder %s169, %s172
      %p181 = scmp.eq.s32.totalorder %s29, 3
      %p182 = por %p180, %p181
      %p183 = scmp.ne.s32.totalorder %s172, %s173
      %p184 = scmp.eq.s32.totalorder %s29, 0
      %p185 = por %p183, %p184
      %p186 = scmp.ne.s32.totalorder %s172, %s173
      %p187 = scmp.eq.s32.totalorder %s30, 3
      %p188 = por %p186, %p187
      %p190 = scmp.ne.s32.totalorder %s173, %s189
      %p191 = scmp.eq.s32.totalorder %s30, 0
      %p192 = por %p190, %p191
      %s193 = ssub.s32 %s31, %s50
      %s194 = ssub.s32 %s32, %s46
      %s195 = sor.u32 %s193, %s194
      %s196 = ssub.s32 %s33, %s42
      %s197 = sor.u32 %s195, %s196
      %p198 = scmp.eq.s32.totalorder %s197, 0
      %s200 = sadd.s32 %s199, 1
      %s201 = scalar_select %p198, %s199, %s200
      %p204 = pneg %p198
      %p205 = scmp.eq.s32.totalorder %s24, 3
      %p206 = por %p204, %p205
      %p207 = scmp.ne.s32.totalorder %s199, %s202
      %p208 = scmp.eq.s32.totalorder %s24, 0
      %p209 = por %p207, %p208
      %p210 = scmp.ne.s32.totalorder %s199, %s202
      %p211 = scmp.eq.s32.totalorder %s29, 3
      %p212 = por %p210, %p211
      %p213 = scmp.ne.s32.totalorder %s202, %s203
      %p214 = scmp.eq.s32.totalorder %s29, 0
      %p215 = por %p213, %p214
      %p216 = scmp.ne.s32.totalorder %s202, %s203
      %p217 = scmp.eq.s32.totalorder %s30, 3
      %p218 = por %p216, %p217
      %p220 = scmp.ne.s32.totalorder %s203, %s219
      %p221 = scmp.eq.s32.totalorder %s30, 0
      %p222 = por %p220, %p221
      %p223 = scmp.le.s32.totalorder 1, %s24
      %p224 = scmp.lt.s32.totalorder %s24, 5
      %p225 = pnand %p223, %p224
      %p226 = pneg %p225
      // Predicated region
      $region9: #{tpu_custom_call.1} parent=5 // pred_check
        _
      $region10: #{tpu_custom_call.1} parent=5 // pred_check_branch
        %228 = sbr.rel (%p225) target = $region12
      $region11: #{tpu_custom_call.1} parent=5 // pred_region
        %s229 = ssub.s32 %s24, 1
      $region12: #{tpu_custom_call.1} parent=5 // pred_fallthru
        _
      %p230 = scmp.lt.s32.totalorder %s24, 4
      // Predicated region
      $region13: #{tpu_custom_call.1} parent=5 // pred_check
        %p231 = pneg %p230
      $region14: #{tpu_custom_call.1} parent=5 // pred_check_branch
        %233 = sbr.rel (%p231) target = $region16
      $region15: #{tpu_custom_call.1} parent=5 // pred_region
        // Predicated region
        $region17: #{tpu_custom_call.1} parent=15 // pred_check
          %p234 = pneg %p67
        $region18: #{tpu_custom_call.1} parent=15 // pred_check_branch
          %236 = sbr.rel (%p234) target = $region20
        $region19: #{tpu_custom_call.1} parent=15 // pred_region
          %s237 = sand.u32 %s57, 1
          %s238 = scalar_lea.sflag [#allocation3], %s237
          %s239 = sand.u32 %s57, 1
          %s240 = smul.addr %s239, 8
          %s241 = scalar_lea.vmem [#allocation2], %s240
          %s242 = smul.u32 2, %s32
          %s244 = ssub.s32 128, 128
          %245 = vsyncadd %s238, %s244
          %s246 = sadd.s32 %s33, %s242
          %s247 = smul.addr %s31, 4
          %s248 = sadd.s32 %s246, %s247
          %s249 = smul.addr %s248, 64
          %s250 = scalar_lea.hbm %s0, %s249
          %s251 = sshll.u32 %s241, 4
          %s252 = int_to_ptr.vmem [resolvable:$true] %s251
          %257 = dma.hbm_to_vmem [thread:$0]  %s250, 128, %s252, %s238, 64, 64, 4
        $region20: #{tpu_custom_call.1} parent=15 // pred_fallthru
          _
        // Predicated region
        $region21: #{tpu_custom_call.1} parent=15 // pred_check
          %p258 = pneg %p95
        $region22: #{tpu_custom_call.1} parent=15 // pred_check_branch
          %260 = sbr.rel (%p258) target = $region24
        $region23: #{tpu_custom_call.1} parent=15 // pred_region
          %s261 = sand.u32 %s24, 1
          %s262 = scalar_lea.sflag [#allocation6], %s261
          %s263 = sand.u32 %s85, 1
          %s264 = smul.addr %s263, 8
          %s265 = scalar_lea.vmem [#allocation5], %s264
          %s266 = smul.u32 2, %s32
          %s268 = ssub.s32 128, 128
          %269 = vsyncadd %s262, %s268
          %s270 = smul.addr %s31, 4
          %s271 = sadd.s32 %s266, %s270
          %s272 = smul.addr %s271, 64
          %s273 = scalar_lea.hbm %s1, %s272
          %s274 = sshll.u32 %s265, 4
          %s275 = int_to_ptr.vmem [resolvable:$true] %s274
          %280 = dma.hbm_to_vmem [thread:$0]  %s273, 128, %s275, %s262, 64, 64, 4
        $region24: #{tpu_custom_call.1} parent=15 // pred_fallthru
          _
        // Predicated region
        $region25: #{tpu_custom_call.1} parent=15 // pred_check
          %p281 = pneg %p123
        $region26: #{tpu_custom_call.1} parent=15 // pred_check_branch
          %283 = sbr.rel (%p281) target = $region28
        $region27: #{tpu_custom_call.1} parent=15 // pred_region
          %s284 = sand.u32 %s24, 1
          %s285 = scalar_lea.sflag [#allocation6], %s284
          %s286 = sand.u32 %s113, 1
          %s287 = smul.addr %s286, 8
          %s288 = scalar_lea.vmem [#allocation7], %s287
          %s289 = smul.u32 2, %s32
          %s291 = ssub.s32 128, 128
          %292 = vsyncadd %s285, %s291
          %s293 = smul.addr %s31, 4
          %s294 = sadd.s32 %s289, %s293
          %s295 = smul.addr %s294, 64
          %s296 = scalar_lea.hbm %s2, %s295
          %s297 = sshll.u32 %s288, 4
          %s298 = int_to_ptr.vmem [resolvable:$true] %s297
          %303 = dma.hbm_to_vmem [thread:$0]  %s296, 128, %s298, %s285, 64, 64, 4
        $region28: #{tpu_custom_call.1} parent=15 // pred_fallthru
          _
        // Predicated region
        $region29: #{tpu_custom_call.1} parent=15 // pred_check
          %p304 = pneg %p149
        $region30: #{tpu_custom_call.1} parent=15 // pred_check_branch
          %306 = sbr.rel (%p304) target = $region32
        $region31: #{tpu_custom_call.1} parent=15 // pred_region
          %p307 = scmp.lt.s32.totalorder %s31, 1
          %s308 = scalar_select %p307, %s31, 1
          %s309 = scalar_lea.vmem %s3, %s308
        $region32: #{tpu_custom_call.1} parent=15 // pred_fallthru
          _
      $region16: #{tpu_custom_call.1} parent=5 // pred_fallthru
        _
      %p310 = scmp.le.s32.totalorder 1, %s24
      %p311 = scmp.lt.s32.totalorder %s24, 5
      %p312 = pnand %p310, %p311
      %p313 = pneg %p312
      // Predicated region
      $region33: #{tpu_custom_call.1} parent=5 // pred_check
        _
      $region34: #{tpu_custom_call.1} parent=5 // pred_check_branch
        %315 = sbr.rel (%p312) target = $region36
      $region35: #{tpu_custom_call.1} parent=5 // pred_region
        %s316 = ssub.s32 %s24, 1
        %s317 = sand.u32 %s60, 1
        %s318 = scalar_lea.sflag [#allocation3], %s317
        %s319 = sand.u32 %s60, 1
        %s320 = smul.addr %s319, 8
        %s321 = scalar_lea.vmem [#allocation2], %s320
        // Predicated region
        $region37: #{tpu_custom_call.1} parent=35 // pred_check
          %p322 = pneg %p73
        $region38: #{tpu_custom_call.1} parent=35 // pred_check_branch
          %324 = sbr.rel (%p322) target = $region40
        $region39: #{tpu_custom_call.1} parent=35 // pred_region
          %325 = dma.done %s318, 128
        $region40: #{tpu_custom_call.1} parent=35 // pred_fallthru
          _
        %s326 = sand.u32 %s29, 1
        %s327 = scalar_lea.sflag [#allocation6], %s326
        %s328 = sand.u32 %s88, 1
        %s329 = smul.addr %s328, 8
        %s330 = scalar_lea.vmem [#allocation5], %s329
        // Predicated region
        $region41: #{tpu_custom_call.1} parent=35 // pred_check
          %p331 = pneg %p101
        $region42: #{tpu_custom_call.1} parent=35 // pred_check_branch
          %333 = sbr.rel (%p331) target = $region44
        $region43: #{tpu_custom_call.1} parent=35 // pred_region
          %334 = dma.done %s327, 128
        $region44: #{tpu_custom_call.1} parent=35 // pred_fallthru
          _
        %s335 = sand.u32 %s29, 1
        %s336 = scalar_lea.sflag [#allocation6], %s335
        %s337 = sand.u32 %s116, 1
        %s338 = smul.addr %s337, 8
        %s339 = scalar_lea.vmem [#allocation7], %s338
        // Predicated region
        $region45: #{tpu_custom_call.1} parent=35 // pred_check
          %p340 = pneg %p129
        $region46: #{tpu_custom_call.1} parent=35 // pred_check_branch
          %342 = sbr.rel (%p340) target = $region48
        $region47: #{tpu_custom_call.1} parent=35 // pred_region
          %343 = dma.done %s336, 128
        $region48: #{tpu_custom_call.1} parent=35 // pred_fallthru
          _
        %s344 = sand.u32 %s60, 1
        %s345 = scalar_lea.sflag [#allocation3], %s344
        %s346 = sand.u32 %s60, 1
        %s347 = smul.addr %s346, 8
        %s348 = scalar_lea.vmem [#allocation2], %s347
        %p349 = pneg %p73
        %p350 = pneg %p70
        %s351 = sand.u32 %s29, 1
        %s352 = scalar_lea.sflag [#allocation6], %s351
        %s353 = sand.u32 %s88, 1
        %s354 = smul.addr %s353, 8
        %s355 = scalar_lea.vmem [#allocation5], %s354
        %p356 = pneg %p101
        %p357 = pneg %p98
        %s358 = sand.u32 %s29, 1
        %s359 = scalar_lea.sflag [#allocation6], %s358
        %s360 = sand.u32 %s116, 1
        %s361 = smul.addr %s360, 8
        %s362 = scalar_lea.vmem [#allocation7], %s361
        %p363 = pneg %p129
        %p364 = pneg %p126
        %p365 = scmp.lt.s32.totalorder %s34, 1
        %s366 = scalar_select %p365, %s34, 1
        %s367 = scalar_lea.vmem %s3, %s366
        %p368 = pneg %p155
        %p369 = pneg %p152
        %p370 = pneg %p185
        %p371 = pneg %p182
        %s372 = sand.u32 %s172, 1
        %s373 = scalar_lea.sflag [#allocation4], %s372
        %s374 = sand.u32 %s172, 1
        %s375 = smul.addr %s374, 16
        %s376 = scalar_lea.vmem [#allocation8], %s375
        %p377 = pneg %p215
        %p378 = pneg %p212
        %s379 = sand.u32 %s202, 1
        %s380 = scalar_lea.sflag [#allocation10], %s379
        %s381 = sand.u32 %s202, 1
        %s382 = smul.addr %s381, 8
        %s383 = scalar_lea.vmem [#allocation9], %s382
        %s384 = smul.u32 2, %s35
        %s385 = smul.u32 2, %s35
        %s386 = smul.u32 2, %s35
        %p387 = scmp.lt.s32.totalorder %s34, 1
        %s388 = scalar_select %p387, %s34, 1
        %s389 = scalar_lea.vmem %s3, %s388
        %s390 = smul.u32 2, %s35
        %s391 = smul.u32 2, %s35
        %v394 = vld [vmem:[%s321] sm:$0xf]
        %v395 = vld [vmem:[%s321 + $0x4] sm:$0xf]
        %v396 = vld [vmem:[%s330] sm:$0xf]
        %v397 = vld [vmem:[%s330 + $0x4] sm:$0xf]
        %v398 = vld [vmem:[%s339] sm:$0xf]
        %v399 = vld [vmem:[%s339 + $0x4] sm:$0xf]
        %v400 = vmul.bf16 %v394, 1043676725
        %v401 = vmul.bf16 %v395, 1043676725
        %v402 = vld [vmem:[%s389] sm:$0x1]
        %v403 = vunpack.c.l.bf16 %v402
        %v404 = vlaneseq
        %v405 = vshrl.u32 %v404, 7
        %v406 = vsub.s32 0, %v405
        %v407 = vrot.slane %v403, %v406
        %vm408 = vcmask 261120
        %v410 = vsel %vm408, %v400, 0
        %v413 = vsel %vm408, %v396, 0
        %415 = vmatprep.subr.bf16.mxu0 0
        %416 = vmatpush1.bf16.xpose.msra.mxu0 %v413
        %417 = vmatprep.subr.bf16.mxu0 0
        %418 = vmatpush1.bf16.xpose.msra.mxu0 0
        %419 = vmatprep.subr.bf16.mxu0 0
        %420 = vmatpush1.bf16.xpose.msra.mxu0 0
        %421 = vmatprep.subr.bf16.mxu0 0
        %422 = vmatpush1.bf16.xpose.msra.mxu0 0
        %423 = vmatprep.subr.bf16.mxu0 0
        %424 = vmatpush1.bf16.xpose.msra.mxu0 0
        %425 = vmatprep.subr.bf16.mxu0 0
        %426 = vmatpush1.bf16.xpose.msra.mxu0 0
        %427 = vmatprep.subr.bf16.mxu0 0
        %428 = vmatpush1.bf16.xpose.msra.mxu0 0
        %429 = vmatprep.subr.bf16.mxu0 0
        %430 = vmatpush1.bf16.xpose.msra.mxu0 0
        %431 = vmatprep.subr.bf16.mxu0 0
        %432 = vmatpush1.bf16.xpose.msra.mxu0 0
        %433 = vmatprep.subr.bf16.mxu0 0
        %434 = vmatpush1.bf16.xpose.msra.mxu0 0
        %435 = vmatprep.subr.bf16.mxu0 0
        %436 = vmatpush1.bf16.xpose.msra.mxu0 0
        %437 = vmatprep.subr.bf16.mxu0 0
        %438 = vmatpush1.bf16.xpose.msra.mxu0 0
        %439 = vmatprep.subr.bf16.mxu0 0
        %440 = vmatpush1.bf16.xpose.msra.mxu0 0
        %441 = vmatprep.subr.bf16.mxu0 0
        %442 = vmatpush1.bf16.xpose.msra.mxu0 0
        %443 = vmatprep.subr.bf16.mxu0 0
        %444 = vmatpush1.bf16.xpose.msra.mxu0 0
        %445 = vmatprep.subr.bf16.mxu0 0
        %446 = vmatpush1.bf16.xpose.msra.mxu0 0
        %447 = vmatprep.mubr.bf16.mxu0 0
        %448 = vmatmul.mubr.bf16.gmra.mrb[0].mxu0 %v410
        %v449 = vpop.f32.mrb[0].mxu0
        %v450 = vadd.f32 %v407, %v449
        %v451 = vpop.f32.mrb[0].mxu0
        %v452 = vpop.f32.mrb[0].mxu0
        %v453 = vpop.f32.mrb[0].mxu0
        %454 = vdwg.mxu0
        %v456 = vsel %vm408, %v401, 0
        %v459 = vsel %vm408, %v397, 0
        %461 = vmatprep.subr.bf16.mxu0 0
        %462 = vmatpush1.bf16.xpose.msra.mxu0 %v459
        %463 = vmatprep.subr.bf16.mxu0 0
        %464 = vmatpush1.bf16.xpose.msra.mxu0 0
        %465 = vmatprep.subr.bf16.mxu0 0
        %466 = vmatpush1.bf16.xpose.msra.mxu0 0
        %467 = vmatprep.subr.bf16.mxu0 0
        %468 = vmatpush1.bf16.xpose.msra.mxu0 0
        %469 = vmatprep.subr.bf16.mxu0 0
        %470 = vmatpush1.bf16.xpose.msra.mxu0 0
        %471 = vmatprep.subr.bf16.mxu0 0
        %472 = vmatpush1.bf16.xpose.msra.mxu0 0
        %473 = vmatprep.subr.bf16.mxu0 0
        %474 = vmatpush1.bf16.xpose.msra.mxu0 0
        %475 = vmatprep.subr.bf16.mxu0 0
        %476 = vmatpush1.bf16.xpose.msra.mxu0 0
        %477 = vmatprep.subr.bf16.mxu0 0
        %478 = vmatpush1.bf16.xpose.msra.mxu0 0
        %479 = vmatprep.subr.bf16.mxu0 0
        %480 = vmatpush1.bf16.xpose.msra.mxu0 0
        %481 = vmatprep.subr.bf16.mxu0 0
        %482 = vmatpush1.bf16.xpose.msra.mxu0 0
        %483 = vmatprep.subr.bf16.mxu0 0
        %484 = vmatpush1.bf16.xpose.msra.mxu0 0
        %485 = vmatprep.subr.bf16.mxu0 0
        %486 = vmatpush1.bf16.xpose.msra.mxu0 0
        %487 = vmatprep.subr.bf16.mxu0 0
        %488 = vmatpush1.bf16.xpose.msra.mxu0 0
        %489 = vmatprep.subr.bf16.mxu0 0
        %490 = vmatpush1.bf16.xpose.msra.mxu0 0
        %491 = vmatprep.subr.bf16.mxu0 0
        %492 = vmatpush1.bf16.xpose.msra.mxu0 0
        %493 = vmatprep.mubr.bf16.mxu0 0
        %494 = vmatmul.mubr.bf16.gmra.mrb[0].mxu0 %v456
        %v495 = vpop.f32.mrb[0].mxu0
        %v496 = vadd.f32 %v407, %v495
        %v497 = vpop.f32.mrb[0].mxu0
        %v498 = vpop.f32.mrb[0].mxu0
        %v499 = vpop.f32.mrb[0].mxu0
        %500 = vdwg.mxu0
        %vm501 = vcmask 64512
        %v502 = vsel %vm501, %v450, -inf
        %503 = vmax.xlane.f32.xlu0 %v502
        %v504 = vpop.xlane.xlu0 %503
        %v505 = vsel %vm501, %v496, -inf
        %506 = vmax.xlane.f32.xlu0 %v505
        %v507 = vpop.xlane.xlu0 %506
        %v508 = vsub.f32 %v450, %v504
        %v509 = vsub.f32 %v496, %v507
        %v510 = vmul.f32 %v508, 1.442695
        %v511 = vpow.pop %v510
        %v512 = vmul.f32 %v509, 1.442695
        %v513 = vpow.pop %v512
        %v514 = vsel %vm501, %v511, 0.0
        %515 = vadd.xlane.f32.xlu0 %v514
        %v516 = vpop.xlane.xlu0 %515
        %v517 = vsel %vm501, %v513, 0.0
        %518 = vadd.xlane.f32.xlu0 %v517
        %v519 = vpop.xlane.xlu0 %518
        %v520 = vrcp.pop %v516
        %v521 = vrcp.pop %v519
        %v522 = vmul.f32 %v511, %v520
        %v523 = vmul.f32 %v513, %v521
        %v524 = vpack.c.bf16 %v522, %v522
        %v525 = vpack.c.bf16 %v523, %v523
        %vm526 = vcmask 60416
        %527 = vst.msk [vmem:[%s383] sm:$0xf] %vm526, %v524
        %528 = vst.msk [vmem:[%s383 + $0x4] sm:$0xf] %vm526, %v525
        %v530 = vsel %vm501, %v524, 0
        %vm532 = vcmask 1043456
        %v534 = vsel %vm532, %v398, 0
        %536 = vmatprep.subr.bf16.mxu0 0
        %537 = vmatpush1.bf16.msra.mxu0 %v534
        %538 = vmatprep.subr.bf16.mxu0 0
        %539 = vmatpush1.bf16.msra.mxu0 0
        %540 = vmatprep.subr.bf16.mxu0 0
        %541 = vmatpush1.bf16.msra.mxu0 0
        %542 = vmatprep.subr.bf16.mxu0 0
        %543 = vmatpush1.bf16.msra.mxu0 0
        %544 = vmatprep.subr.bf16.mxu0 0
        %545 = vmatpush1.bf16.msra.mxu0 0
        %546 = vmatprep.subr.bf16.mxu0 0
        %547 = vmatpush1.bf16.msra.mxu0 0
        %548 = vmatprep.subr.bf16.mxu0 0
        %549 = vmatpush1.bf16.msra.mxu0 0
        %550 = vmatprep.subr.bf16.mxu0 0
        %551 = vmatpush1.bf16.msra.mxu0 0
        %552 = vmatprep.subr.bf16.mxu0 0
        %553 = vmatpush1.bf16.msra.mxu0 0
        %554 = vmatprep.subr.bf16.mxu0 0
        %555 = vmatpush1.bf16.msra.mxu0 0
        %556 = vmatprep.subr.bf16.mxu0 0
        %557 = vmatpush1.bf16.msra.mxu0 0
        %558 = vmatprep.subr.bf16.mxu0 0
        %559 = vmatpush1.bf16.msra.mxu0 0
        %560 = vmatprep.subr.bf16.mxu0 0
        %561 = vmatpush1.bf16.msra.mxu0 0
        %562 = vmatprep.subr.bf16.mxu0 0
        %563 = vmatpush1.bf16.msra.mxu0 0
        %564 = vmatprep.subr.bf16.mxu0 0
        %565 = vmatpush1.bf16.msra.mxu0 0
        %566 = vmatprep.subr.bf16.mxu0 0
        %567 = vmatpush1.bf16.msra.mxu0 0
        %568 = vmatprep.mubr.bf16.mxu0 0
        %569 = vmatmul.mubr.bf16.gmra.mrb[0].mxu0 %v530
        %v570 = vpop.f32.mrb[0].mxu0
        %v571 = vadd.f32 0.0, %v570
        %v572 = vpop.f32.mrb[0].mxu0
        %v573 = vpop.f32.mrb[0].mxu0
        %v574 = vpop.f32.mrb[0].mxu0
        %575 = vdwg.mxu0
        %v577 = vsel %vm501, %v525, 0
        %v580 = vsel %vm532, %v399, 0
        %582 = vmatprep.subr.bf16.mxu0 0
        %583 = vmatpush1.bf16.msra.mxu0 %v580
        %584 = vmatprep.subr.bf16.mxu0 0
        %585 = vmatpush1.bf16.msra.mxu0 0
        %586 = vmatprep.subr.bf16.mxu0 0
        %587 = vmatpush1.bf16.msra.mxu0 0
        %588 = vmatprep.subr.bf16.mxu0 0
        %589 = vmatpush1.bf16.msra.mxu0 0
        %590 = vmatprep.subr.bf16.mxu0 0
        %591 = vmatpush1.bf16.msra.mxu0 0
        %592 = vmatprep.subr.bf16.mxu0 0
        %593 = vmatpush1.bf16.msra.mxu0 0
        %594 = vmatprep.subr.bf16.mxu0 0
        %595 = vmatpush1.bf16.msra.mxu0 0
        %596 = vmatprep.subr.bf16.mxu0 0
        %597 = vmatpush1.bf16.msra.mxu0 0
        %598 = vmatprep.subr.bf16.mxu0 0
        %599 = vmatpush1.bf16.msra.mxu0 0
        %600 = vmatprep.subr.bf16.mxu0 0
        %601 = vmatpush1.bf16.msra.mxu0 0
        %602 = vmatprep.subr.bf16.mxu0 0
        %603 = vmatpush1.bf16.msra.mxu0 0
        %604 = vmatprep.subr.bf16.mxu0 0
        %605 = vmatpush1.bf16.msra.mxu0 0
        %606 = vmatprep.subr.bf16.mxu0 0
        %607 = vmatpush1.bf16.msra.mxu0 0
        %608 = vmatprep.subr.bf16.mxu0 0
        %609 = vmatpush1.bf16.msra.mxu0 0
        %610 = vmatprep.subr.bf16.mxu0 0
        %611 = vmatpush1.bf16.msra.mxu0 0
        %612 = vmatprep.subr.bf16.mxu0 0
        %613 = vmatpush1.bf16.msra.mxu0 0
        %614 = vmatprep.mubr.bf16.mxu0 0
        %615 = vmatmul.mubr.bf16.gmra.mrb[0].mxu0 %v577
        %v616 = vpop.f32.mrb[0].mxu0
        %v617 = vadd.f32 0.0, %v616
        %v618 = vpop.f32.mrb[0].mxu0
        %v619 = vpop.f32.mrb[0].mxu0
        %v620 = vpop.f32.mrb[0].mxu0
        %621 = vdwg.mxu0
        %622 = vst.msk [vmem:[%s376] sm:$0xff] %vm408, %v571
        %623 = vst.msk [vmem:[%s376 + $0x8] sm:$0xff] %vm408, %v617
        %s624 = sand.u32 %s172, 1
        %s625 = scalar_lea.sflag [#allocation4], %s624
        %s626 = sand.u32 %s172, 1
        %s627 = smul.addr %s626, 16
        %s628 = scalar_lea.vmem [#allocation8], %s627
        %s629 = sand.u32 %s202, 1
        %s630 = scalar_lea.sflag [#allocation10], %s629
        %s631 = sand.u32 %s202, 1
        %s632 = smul.addr %s631, 8
        %s633 = scalar_lea.vmem [#allocation9], %s632
        // Predicated region
        $region49: #{tpu_custom_call.1} parent=35 // pred_check
          %p634 = pneg %p182
        $region50: #{tpu_custom_call.1} parent=35 // pred_check_branch
          %636 = sbr.rel (%p634) target = $region52
        $region51: #{tpu_custom_call.1} parent=35 // pred_region
          %s637 = smul.u32 2, %s35
          %s639 = ssub.s32 256, 256
          %640 = vsyncadd %s625, %s639
          %s641 = sadd.s32 %s36, %s637
          %s642 = smul.addr %s34, 4
          %s643 = sadd.s32 %s641, %s642
          %s644 = smul.addr %s643, 128
          %s645 = scalar_lea.hbm %s4, %s644
          %s646 = sshll.u32 %s628, 4
          %s647 = int_to_ptr.vmem [resolvable:$true] %s646
          %652 = dma.vmem_to_hbm [thread:$0]  %s647, 256, %s645, %s625, 128, 128, 8
        $region52: #{tpu_custom_call.1} parent=35 // pred_fallthru
          _
        // Predicated region
        $region53: #{tpu_custom_call.1} parent=35 // pred_check
          %p653 = pneg %p212
        $region54: #{tpu_custom_call.1} parent=35 // pred_check_branch
          %655 = sbr.rel (%p653) target = $region56
        $region55: #{tpu_custom_call.1} parent=35 // pred_region
          %s656 = smul.u32 2, %s35
          %s658 = ssub.s32 128, 128
          %659 = vsyncadd %s630, %s658
          %s660 = sadd.s32 %s36, %s656
          %s661 = smul.addr %s34, 4
          %s662 = sadd.s32 %s660, %s661
          %s663 = smul.addr %s662, 64
          %s664 = scalar_lea.hbm %s5, %s663
          %s665 = sshll.u32 %s633, 4
          %s666 = int_to_ptr.vmem [resolvable:$true] %s665
          %671 = dma.vmem_to_hbm [thread:$0]  %s666, 128, %s664, %s630, 64, 64, 4
        $region56: #{tpu_custom_call.1} parent=35 // pred_fallthru
          _
      $region36: #{tpu_custom_call.1} parent=5 // pred_fallthru
        _
      %p672 = scmp.le.s32.totalorder 2, %s24
      // Predicated region
      $region57: #{tpu_custom_call.1} parent=5 // pred_check
        %p673 = pneg %p672
      $region58: #{tpu_custom_call.1} parent=5 // pred_check_branch
        %675 = sbr.rel (%p673) target = $region60
      $region59: #{tpu_custom_call.1} parent=5 // pred_region
        %s676 = ssub.s32 %s24, 2
        // Predicated region
        $region61: #{tpu_custom_call.1} parent=59 // pred_check
          %p677 = pneg %p188
        $region62: #{tpu_custom_call.1} parent=59 // pred_check_branch
          %679 = sbr.rel (%p677) target = $region64
        $region63: #{tpu_custom_call.1} parent=59 // pred_region
          %s680 = sand.u32 %s173, 1
          %s681 = scalar_lea.sflag [#allocation4], %s680
          %s682 = sand.u32 %s173, 1
          %s683 = smul.addr %s682, 16
          %s684 = scalar_lea.vmem [#allocation8], %s683
          %685 = dma.done %s681, 256
        $region64: #{tpu_custom_call.1} parent=59 // pred_fallthru
          _
        // Predicated region
        $region65: #{tpu_custom_call.1} parent=59 // pred_check
          %p686 = pneg %p218
        $region66: #{tpu_custom_call.1} parent=59 // pred_check_branch
          %688 = sbr.rel (%p686) target = $region68
        $region67: #{tpu_custom_call.1} parent=59 // pred_region
          %s689 = sand.u32 %s203, 1
          %s690 = scalar_lea.sflag [#allocation10], %s689
          %s691 = sand.u32 %s203, 1
          %s692 = smul.addr %s691, 8
          %s693 = scalar_lea.vmem [#allocation9], %s692
          %694 = dma.done %s690, 128
        $region68: #{tpu_custom_call.1} parent=59 // pred_fallthru
          _
      $region60: #{tpu_custom_call.1} parent=5 // pred_fallthru
        _
    $region6: #{tpu_custom_call.1} parent=1 // loop_footer
      %s28 = sadd.s32 1, %s24
    $region7: #{tpu_custom_call.1} parent=1 // loop_footer_branch
      %23 = sbr.rel target = $region3
    $region8: #{tpu_custom_call.1} parent=1 // loop_exit
      _
    %695 = vsyncpa [#allocation3], 1
    %s696 = scalar_lea.sflag [#allocation3], 1
    %697 = vsyncpa %s696, 1
    %698 = vsyncpa [#allocation6], 1
    %s699 = scalar_lea.sflag [#allocation6], 1
    %700 = vsyncpa %s699, 1
    %701 = vsyncpa [#allocation4], 1
    %s702 = scalar_lea.sflag [#allocation4], 1
    %703 = vsyncpa %s702, 1
    %704 = vsyncpa [#allocation10], 1
    %s705 = scalar_lea.sflag [#allocation10], 1
    %706 = vsyncpa %s705, 1

</llo_original>
